<compile_context>
chip_gen: v5e
topology: v5e:2x2
jax: 0.10.0
libtpu: 0.0.40
codegen_flags: <defaults>
</compile_context>

<pallas_src>
import functools

import jax
import jax.numpy as jnp
from jax.experimental import pallas as pl
from jax.experimental.pallas import tpu as pltpu

LANES = 128


def _tpu_generation():
    """Best-effort TPU generation (5, 6, 7, ...); 0 if unknown."""
    try:
        kind = jax.devices()[0].device_kind.lower()
    except Exception:
        return 0
    for g in (7, 6, 5, 4):
        if f"v{g}" in kind:
            return g
    return 0


def _sublane_multiple(dtype):
    # Native sublane packing: f32 -> 8, bf16 -> 16, int8/bool -> 32.
    return max(8, 32 // dtype.itemsize)


def _clamped_bce(p, t):
    # PyTorch F.binary_cross_entropy clamps each log term at -100; the clamp
    # must be applied BEFORE multiplying by t / (1-t) so 0 * (-100) == 0.
    log_p = jnp.maximum(jnp.log(p), -100.0)
    log_1mp = jnp.maximum(jnp.log(1.0 - p), -100.0)
    return -(log_1mp + t * (log_p - log_1mp))


def _make_bce_kernel(block_rows, steps, rows, need_mask):
    def kernel(x_ref, t_ref, out_ref):
        c = pl.program_id(0)
        i = pl.program_id(1)

        @pl.when(i == 0)
        def _():
            out_ref[...] = jnp.zeros_like(out_ref)

        # Native-dtype load, f32 math.
        p = x_ref[...].astype(jnp.float32)
        t = t_ref[...].astype(jnp.float32)
        bce = _clamped_bce(p, t)

        if need_mask:
            # Zero rows past the real extent: the ragged last block and any
            # duplicated fully-out-of-range block from the core split.
            row0 = (c * steps + i) * block_rows
            row_idx = row0 + jax.lax.broadcasted_iota(
                jnp.int32, (block_rows, LANES), 0)
            bce = jnp.where(row_idx < rows, bce, 0.0)

        # Fold (block_rows, 128) -> (8, 128) with pure VPU vreg adds; the one
        # expensive cross-lane/sublane reduce happens outside on the tiny output.
        out_ref[...] += jnp.sum(bce.reshape(-1, 8, LANES), axis=0)

    return kernel


def _bce_sum_pallas(x2, t2):
    """Sum of clamped binary cross entropy over lane-dense (rows, 128) arrays."""
    rows = x2.shape[0]
    gen = _tpu_generation()

    cap = 8192 if gen >= 6 else 4096           # 4 MiB / 2 MiB f32 per block
    sub = max(_sublane_multiple(x2.dtype), _sublane_multiple(t2.dtype))
    rows_rounded = ((rows + sub - 1) // sub) * sub
    block_rows = min(cap, rows_rounded)

    total_blocks = -(-rows // block_rows)
    ncores = 2 if (gen >= 7 and total_blocks >= 2) else 1
    steps = -(-total_blocks // ncores)
    need_mask = (ncores * steps * block_rows) != rows

    last_block = total_blocks - 1
    in_spec = pl.BlockSpec(
        (block_rows, LANES),
        lambda c, i: (jnp.minimum(c * steps + i, last_block), 0))

    if ncores > 1 and hasattr(pltpu, "CORE_PARALLEL"):
        dim_sem = (pltpu.CORE_PARALLEL, pltpu.ARBITRARY)
    elif ncores > 1:
        dim_sem = ("parallel", "arbitrary")
    else:
        dim_sem = ("arbitrary", "arbitrary")

    compiler_params = pltpu.CompilerParams(
        dimension_semantics=dim_sem,
        vmem_limit_bytes=(40 << 20) if gen in (5, 6) else None,
    )

    n_elems = rows * LANES
    cost = pl.CostEstimate(
        flops=9 * n_elems,
        transcendentals=2 * n_elems,
        bytes_accessed=n_elems * (x2.dtype.itemsize + t2.dtype.itemsize)
        + ncores * 8 * LANES * 4,
    )

    partials = pl.pallas_call(
        _make_bce_kernel(block_rows, steps, rows, need_mask),
        out_shape=jax.ShapeDtypeStruct((ncores * 8, LANES), jnp.float32),
        grid_spec=pltpu.PrefetchScalarGridSpec(
            num_scalar_prefetch=0,
            grid=(ncores, steps),
            in_specs=[in_spec, in_spec],
            out_specs=pl.BlockSpec((8, LANES), lambda c, i: (c, 0)),
        ),
        compiler_params=compiler_params,
        cost_estimate=cost,
    )(x2, t2)
    return jnp.sum(partials)


@functools.partial(jax.jit, static_argnames=("alpha", "gamma"))
def focal_loss(inputs, targets, alpha=0.8, gamma=1):
    """Matches FocalLoss.forward(inputs, targets) from BayesianSeg/loss/losses.py."""
    if targets.dtype == jnp.bool_:
        targets = targets.astype(jnp.int8)      # cheap; kernel upcasts to f32

    x_flat = inputs.reshape(-1)
    t_flat = targets.reshape(-1)
    n = x_flat.shape[0]
    n_main = (n // LANES) * LANES

    bce_sum = jnp.float32(0.0)
    if n_main > 0:
        rows = n_main // LANES
        # Free bitcast when n % 128 == 0 (the common case); otherwise only the
        # main prefix is sliced and the <128-element tail is handled below.
        x_main = x_flat if n_main == n else x_flat[:n_main]
        t_main = t_flat if n_main == n else t_flat[:n_main]
        bce_sum = _bce_sum_pallas(x_main.reshape(rows, LANES),
                                  t_main.reshape(rows, LANES))
    if n_main < n:
        xt = x_flat[n_main:].astype(jnp.float32)
        tt = t_flat[n_main:].astype(jnp.float32)
        bce_sum = bce_sum + jnp.sum(_clamped_bce(xt, tt))

    bce = bce_sum / jnp.float32(n)               # reduction='mean'
    bce_exp = jnp.exp(-bce)
    return alpha * (1.0 - bce_exp) ** gamma * bce


if __name__ == "__main__":
    key = jax.random.PRNGKey(0)
    k1, k2 = jax.random.split(key)
    # NCHW-shaped probabilities and binary (float) targets; the module just
    # flattens whatever it is given.
    x = jax.nn.sigmoid(jax.random.normal(k1, (2, 4, 16, 16), jnp.float32))
    t = (jax.random.uniform(k2, (2, 4, 16, 16)) > 0.5).astype(jnp.float32)

    out = focal_loss(x, t, alpha=0.8, gamma=1)
    out = jax.block_until_ready(out)

    # Pure-JAX reference check.
    bce_ref = jnp.mean(_clamped_bce(x.reshape(-1), t.reshape(-1)))
    ref = 0.8 * (1.0 - jnp.exp(-bce_ref)) ** 1 * bce_ref
    assert jnp.allclose(out, ref, rtol=1e-5, atol=1e-6), (out, ref)

    print("KERNEL_OK")
</pallas_src>

<mosaic_0001>
module attributes {stable_mosaic.version = 11 : i64} {
  func.func @kernel(%arg0: i32, %arg1: i32, %arg2: memref<16x128xf32, #tpu.memory_space<vmem>>, %arg3: memref<16x128xf32, #tpu.memory_space<vmem>>, %arg4: memref<8x128xf32, #tpu.memory_space<vmem>>) attributes {dimension_semantics = [#tpu.dimension_semantics<arbitrary>, #tpu.dimension_semantics<arbitrary>], iteration_bounds = array<i64: 1, 1>, scalar_prefetch = 0 : i64, scratch_operands = 0 : i64, tpu.core_type = #tpu.core_type<tc>, window_params = [{transform_indices = @transform_0, window_bounds = array<i64: 16, 128>}, {transform_indices = @transform_1, window_bounds = array<i64: 16, 128>}, {transform_indices = @transform_2, window_bounds = array<i64: 8, 128>}]} {
    %c0_i32 = arith.constant 0 : i32
    %0 = arith.cmpi eq, %arg1, %c0_i32 : i32
    %1 = arith.extui %0 : i1 to i32
    %c0_i32_0 = arith.constant 0 : i32
    %2 = arith.cmpi ne, %1, %c0_i32_0 : i32
    scf.if %2 {
      %cst_12 = arith.constant 0.000000e+00 : f32
      %23 = vector.broadcast %cst_12 : f32 to vector<8x128xf32>
      %c0_13 = arith.constant 0 : index
      %c0_14 = arith.constant 0 : index
      %24 = vector.load %arg4[%c0_13, %c0_14] : memref<8x128xf32, #tpu.memory_space<vmem>>, vector<8x128xf32>
      tpu.vector_store %arg4[%c0_13, %c0_14], %23 {strides = array<i32>} : memref<8x128xf32, #tpu.memory_space<vmem>>, vector<8x128xf32>,
    } else {
    }
    %c0 = arith.constant 0 : index
    %c0_1 = arith.constant 0 : index
    %3 = vector.load %arg2[%c0, %c0_1] : memref<16x128xf32, #tpu.memory_space<vmem>>, vector<16x128xf32>
    %c0_2 = arith.constant 0 : index
    %c0_3 = arith.constant 0 : index
    %4 = vector.load %arg3[%c0_2, %c0_3] : memref<16x128xf32, #tpu.memory_space<vmem>>, vector<16x128xf32>
    %5 = math.log %3 : vector<16x128xf32>
    %cst = arith.constant -1.000000e+02 : f32
    %6 = vector.broadcast %cst : f32 to vector<16x128xf32>
    %7 = arith.maximumf %5, %6 : vector<16x128xf32>
    %cst_4 = arith.constant 1.000000e+00 : f32
    %8 = vector.broadcast %cst_4 : f32 to vector<16x128xf32>
    %9 = arith.subf %8, %3 : vector<16x128xf32>
    %10 = math.log %9 : vector<16x128xf32>
    %cst_5 = arith.constant -1.000000e+02 : f32
    %11 = vector.broadcast %cst_5 : f32 to vector<16x128xf32>
    %12 = arith.maximumf %10, %11 : vector<16x128xf32>
    %13 = arith.subf %7, %12 : vector<16x128xf32>
    %14 = arith.mulf %4, %13 : vector<16x128xf32>
    %15 = arith.addf %12, %14 : vector<16x128xf32>
    %cst_6 = arith.constant 0.000000e+00 : f32
    %16 = vector.broadcast %cst_6 : f32 to vector<16x128xf32>
    %17 = arith.subf %16, %15 : vector<16x128xf32>
    %c0_7 = arith.constant 0 : index
    %c0_8 = arith.constant 0 : index
    %18 = vector.load %arg4[%c0_7, %c0_8] : memref<8x128xf32, #tpu.memory_space<vmem>>, vector<8x128xf32>
    %19 = vector.shape_cast %17 : vector<16x128xf32> to vector<2x8x128xf32>
    %cst_9 = arith.constant dense<0.000000e+00> : vector<8x128xf32>
    %20 = vector.multi_reduction <add>, %19, %cst_9 [0] : vector<2x8x128xf32> to vector<8x128xf32>
    %21 = arith.addf %18, %20 : vector<8x128xf32>
    %c0_10 = arith.constant 0 : index
    %c0_11 = arith.constant 0 : index
    %22 = vector.load %arg4[%c0_10, %c0_11] : memref<8x128xf32, #tpu.memory_space<vmem>>, vector<8x128xf32>
    tpu.vector_store %arg4[%c0_10, %c0_11], %21 {strides = array<i32>} : memref<8x128xf32, #tpu.memory_space<vmem>>, vector<8x128xf32>,
    return
  }
  func.func @transform_0(%arg0: i32, %arg1: i32) -> (i32, i32) {
    %c1_i32 = arith.constant 1 : i32
    %0 = arith.muli %arg0, %c1_i32 : i32
    %1 = arith.addi %0, %arg1 : i32
    %c0_i32 = arith.constant 0 : i32
    %2 = arith.minsi %1, %c0_i32 : i32
    %c0_i32_0 = arith.constant 0 : i32
    %c0_i32_1 = arith.constant 0 : i32
    return %2, %c0_i32_0 : i32, i32
  }
  func.func @transform_1(%arg0: i32, %arg1: i32) -> (i32, i32) {
    %c1_i32 = arith.constant 1 : i32
    %0 = arith.muli %arg0, %c1_i32 : i32
    %1 = arith.addi %0, %arg1 : i32
    %c0_i32 = arith.constant 0 : i32
    %2 = arith.minsi %1, %c0_i32 : i32
    %c0_i32_0 = arith.constant 0 : i32
    %c0_i32_1 = arith.constant 0 : i32
    return %2, %c0_i32_0 : i32, i32
  }
  func.func @transform_2(%arg0: i32, %arg1: i32) -> (i32, i32) {
    %c0_i32 = arith.constant 0 : i32
    %c0_i32_0 = arith.constant 0 : i32
    return %arg0, %c0_i32 : i32, i32
  }
}

</mosaic_0001>

<llo_original>
// kernel: focal_loss.1
$region0: #{focal_loss.1}
  #allocation0 [shape = 'u32[]', space=smem, size = 0x4, offset = 0x4, fixed_abs, tag = 'smem constant byte address 0x4 - core index']
  #allocation1 [shape = 'u32[72,128]{1,0:T(1,128)}', space=vmem, size = 0x9000, scoped, tag = 'internal scratch']
  %s0 = inlined_call_operand.vmem [shape: f32[16,128], index: 0, kind: input, shape index: {}]
  %s1 = inlined_call_operand.vmem [shape: f32[16,128], index: 1, kind: input, shape index: {}]
  %s2 = inlined_call_operand.vmem [shape: f32[8,128], index: 2, kind: output, shape index: {}]
  %s3 = sld [smem:[#allocation0]]
  $region22: #{focal_loss.1} parent=0
    _
  %s5 = ssub.s32 1, %s3
  %s6 = scalar_select 0, %s5, %s3
  // Predicated region
  $region2: #{focal_loss.1} parent=0 // pred_check
    _
  $region3: #{focal_loss.1} parent=0 // pred_check_branch
    %8 = sbr.rel (0) target = $region5
  $region4: #{focal_loss.1} parent=0 // pred_region
    %s9 = sadd.s32 0, 0
    %p10 = scmp.lt.s32.totalorder %s9, 0
    %s11 = scalar_select %p10, %s9, 0
    %s12 = smul.u32 2, %s11
    %p13 = scmp.lt.s32.totalorder %s12, 1
    %s14 = scalar_select %p13, %s12, 1
    %s15 = smul.addr %s14, 8
    %s16 = scalar_lea.vmem %s0, %s15
    %s17 = sadd.s32 0, 0
    %p18 = scmp.lt.s32.totalorder %s17, 0
    %s19 = scalar_select %p18, %s17, 0
    %s20 = smul.u32 2, %s19
  $region5: #{focal_loss.1} parent=0 // pred_fallthru
    _
  // Predicated region
  $region6: #{focal_loss.1} parent=0 // pred_check
    _
  $region7: #{focal_loss.1} parent=0 // pred_check_branch
    %22 = sbr.rel (0) target = $region9
  $region8: #{focal_loss.1} parent=0 // pred_region
    %s23 = sadd.s32 0, 0
    %p24 = scmp.lt.s32.totalorder %s23, 0
    %s25 = scalar_select %p24, %s23, 0
    %s26 = smul.u32 2, %s25
    %p27 = scmp.lt.s32.totalorder %s26, 1
    %s28 = scalar_select %p27, %s26, 1
    %s29 = smul.addr %s28, 8
    %s30 = scalar_lea.vmem %s1, %s29
    %s31 = sadd.s32 0, 0
    %p32 = scmp.lt.s32.totalorder %s31, 0
    %s33 = scalar_select %p32, %s31, 0
    %s34 = smul.u32 2, %s33
  $region9: #{focal_loss.1} parent=0 // pred_fallthru
    _
  %s35 = sadd.s32 0, 0
  %p36 = scmp.lt.s32.totalorder %s35, 0
  %s37 = scalar_select %p36, %s35, 0
  %s38 = smul.u32 2, %s37
  %p39 = scmp.lt.s32.totalorder %s38, 1
  %s40 = scalar_select %p39, %s38, 1
  %s41 = smul.addr %s40, 8
  %s42 = scalar_lea.vmem %s0, %s41
  %s43 = sadd.s32 0, 0
  %p44 = scmp.lt.s32.totalorder %s43, 0
  %s45 = scalar_select %p44, %s43, 0
  %s46 = smul.u32 2, %s45
  %p47 = scmp.lt.s32.totalorder %s46, 1
  %s48 = scalar_select %p47, %s46, 1
  %s49 = smul.addr %s48, 8
  %s50 = scalar_lea.vmem %s1, %s49
  %s51 = sadd.s32 0, 0
  %p52 = scmp.lt.s32.totalorder %s51, 0
  %s53 = scalar_select %p52, %s51, 0
  %s54 = smul.u32 2, %s53
  %p55 = scmp.lt.s32.totalorder %s54, 1
  %s56 = scalar_select %p55, %s54, 1
  %s57 = smul.addr %s56, 8
  %s58 = scalar_lea.vmem %s0, %s57
  %s59 = sadd.s32 0, 0
  %p60 = scmp.lt.s32.totalorder %s59, 0
  %s61 = scalar_select %p60, %s59, 0
  %s62 = smul.u32 2, %s61
  %s63 = sadd.s32 0, 0
  %p64 = scmp.lt.s32.totalorder %s63, 0
  %s65 = scalar_select %p64, %s63, 0
  %s66 = smul.u32 2, %s65
  %p67 = scmp.lt.s32.totalorder %s66, 1
  %s68 = scalar_select %p67, %s66, 1
  %s69 = smul.addr %s68, 8
  %s70 = scalar_lea.vmem %s1, %s69
  %s71 = sadd.s32 0, 0
  %p72 = scmp.lt.s32.totalorder %s71, 0
  %s73 = scalar_select %p72, %s71, 0
  %s74 = smul.u32 2, %s73
  %p75 = scmp.eq.s32.totalorder 0, 0
  // Predicated region
  $region10: #{focal_loss.1} parent=0 // pred_check
    %p76 = pneg %p75
  $region11: #{focal_loss.1} parent=0 // pred_check_branch
    %78 = sbr.rel (%p76) target = $region13
  $region12: #{focal_loss.1} parent=0 // pred_region
    %79 = vst [vmem:[%s2] sm:$0xff] 0.0
  $region13: #{focal_loss.1} parent=0 // pred_fallthru
    _
  %v80 = vld [vmem:[%s58] sm:$0xff]
  %v81 = vld [vmem:[%s58 + $0x8] sm:$0xff]
  %v82 = vld [vmem:[%s70] sm:$0xff]
  %v83 = vld [vmem:[%s70 + $0x8] sm:$0xff]
  %v84 = vlog2.pop %v80
  %v85 = vmul.f32 %v84, 0.6931472
  %v86 = vlog2.pop %v81
  %v87 = vmul.f32 %v86, 0.6931472
  %v88 = vmax.f32 %v85, -100.0
  %v89 = vmax.f32 %v87, -100.0
  %v90 = vsub.f32 1.0, %v80
  %v91 = vsub.f32 1.0, %v81
  %v92 = vlog2.pop %v90
  %v93 = vmul.f32 %v92, 0.6931472
  %v94 = vlog2.pop %v91
  %v95 = vmul.f32 %v94, 0.6931472
  %v96 = vmax.f32 %v93, -100.0
  %v97 = vmax.f32 %v95, -100.0
  %v98 = vsub.f32 %v88, %v96
  %v99 = vsub.f32 %v89, %v97
  %v100 = vmul.f32 %v82, %v98
  %v101 = vmul.f32 %v83, %v99
  %v102 = vadd.f32 %v96, %v100
  %v103 = vadd.f32 %v97, %v101
  %v104 = vsub.f32 0.0, %v102
  %v105 = vsub.f32 0.0, %v103
  %v106 = vld [vmem:[%s2] sm:$0xff]
  %v107 = vadd.f32 %v104, %v105
  %v108 = vadd.f32 %v106, %v107
  %109 = vst [vmem:[%s2] sm:$0xff] %v108
  // Predicated region
  $region14: #{focal_loss.1} parent=0 // pred_check
    _
  $region15: #{focal_loss.1} parent=0 // pred_check_branch
    %111 = sbr.rel (0) target = $region17
  $region16: #{focal_loss.1} parent=0 // pred_region
    _
  $region17: #{focal_loss.1} parent=0 // pred_fallthru
    _
  // Predicated region
  $region18: #{focal_loss.1} parent=0 // pred_check
    _
  $region19: #{focal_loss.1} parent=0 // pred_check_branch
    %113 = sbr.rel (0) target = $region21
  $region20: #{focal_loss.1} parent=0 // pred_region
    _
  $region21: #{focal_loss.1} parent=0 // pred_fallthru
    _

</llo_original>
